<compile_context>
chip_gen: v7x
topology: tpu7x:2x2x1
jax: 0.10.0
libtpu: 0.0.40
codegen_flags: <defaults>
</compile_context>

<pallas_src>
import numpy as np
import jax
import jax.numpy as jnp
from jax.experimental import pallas as pl
from jax.experimental.pallas import tpu as pltpu

_LANE = 128
_MAX_TILE_LANES = 32768        # cap on spatial positions per grid step
_VMEM_INPUT_BUDGET = 8 << 20   # bytes for the double-buffered input streams


def _round_up(x, m):
    return (x + m - 1) // m * m


def _make_kernel(C, tile_s, s_true, m_total, a, b, needs_mask):
    inv_m = 1.0 / float(m_total)
    inv_c = 1.0 / float(C)
    a = float(a)
    b = float(b)

    def kernel(x_ref, t_ref, out_ref, inter_acc, psum_acc, tsum_acc, ce_acc):
        n = pl.program_id(0)
        s = pl.program_id(1)

        @pl.when(jnp.logical_and(n == 0, s == 0))
        def _():
            inter_acc[...] = jnp.zeros_like(inter_acc)
            psum_acc[...] = jnp.zeros_like(psum_acc)
            tsum_acc[...] = jnp.zeros_like(tsum_acc)
            ce_acc[...] = jnp.zeros_like(ce_acc)

        x = x_ref[0].astype(jnp.float32)              # (C, T) logits
        t = t_ref[0]                                  # (1, T) int32 labels

        # one-hot of the target along the class (sublane) axis
        cls = jax.lax.broadcasted_iota(jnp.int32, (C, tile_s), 0)
        onehot = (cls == t).astype(jnp.float32)       # (C, T)

        # numerically stable softmax / log-softmax along the class axis
        mx = jnp.max(x, axis=0, keepdims=True)        # (1, T)
        e = jnp.exp(x - mx)                           # (C, T)
        se = jnp.sum(e, axis=0, keepdims=True)        # (1, T)
        inv_se = 1.0 / se                             # (1, T)
        log_se = jnp.log(se)                          # (1, T)

        if needs_mask:
            col = s * tile_s + jax.lax.broadcasted_iota(jnp.int32, (1, tile_s), 1)
            valid = (col < s_true).astype(jnp.float32)
            inv_se = inv_se * valid                   # masks softmax sums
            onehot = onehot * valid                   # masks counts / CE pick

        p = e * inv_se                                # (C, T) softmax (masked)

        # per-voxel CE:  -log_softmax[target] = mx + log_se - x[target]
        x_at_t = jnp.sum(x * onehot, axis=0, keepdims=True)            # (1, T)
        if needs_mask:
            ce = (mx + log_se) * valid - x_at_t
        else:
            ce = mx + log_se - x_at_t

        inter_acc[...] += jnp.sum(p * onehot, axis=1, keepdims=True)   # (C, 1)
        psum_acc[...] += jnp.sum(p, axis=1, keepdims=True)             # (C, 1)
        tsum_acc[...] += jnp.sum(onehot, axis=1, keepdims=True)        # (C, 1)
        ce_acc[...] += jnp.sum(ce, axis=1, keepdims=True)              # (1, 1)

        @pl.when(jnp.logical_and(n == pl.num_programs(0) - 1,
                                 s == pl.num_programs(1) - 1))
        def _():
            inter = inter_acc[...]
            dice = 1.0 - (2.0 * inter + 1.0) / (psum_acc[...] + tsum_acc[...] + 1.0)
            dice_mean = jnp.sum(dice, axis=0, keepdims=True) * inv_c   # (1, 1)
            ce_mean = ce_acc[...] * inv_m                              # (1, 1)
            out_ref[...] = a * ce_mean + b * dice_mean

    return kernel


def multi_loss_ce_dice(inputs, target, a=0.2, b=0.8):
    """Pallas TPU implementation of Multi_loss_ce_dice.forward (scalar f32).

    inputs: (N, C, *spatial) logits (C classes, softmax over dim 1)
    target: (N, *spatial) integer class labels in [0, C)
    """
    N = inputs.shape[0]
    C = inputs.shape[1]
    S = int(np.prod(inputs.shape[2:]))
    M = N * S

    x3 = inputs.reshape(N, C, S)                         # metadata-only reshape
    t2 = target.reshape(N, S).astype(jnp.int32)

    # Large lane tile (multiple of 128) that fits comfortably in VMEM.
    bytes_per_lane = (C * 4 + 4) * 2                     # f32 logits + i32 tgt, 2 buffers
    cap = max(_LANE, min(_MAX_TILE_LANES,
                         (_VMEM_INPUT_BUDGET // bytes_per_lane) // _LANE * _LANE))
    s_lane = _round_up(S, _LANE)
    tile_s = min(s_lane, cap)
    s_padded = _round_up(S, tile_s)
    needs_mask = s_padded != S
    if needs_mask:
        # Correctness fallback for ragged spatial sizes; padded columns are
        # masked out inside the kernel (zero-padded logits are benign).
        x3 = jnp.pad(x3, ((0, 0), (0, 0), (0, s_padded - S)))
        t2 = jnp.pad(t2, ((0, 0), (0, s_padded - S)))
    t3 = t2.reshape(N, 1, s_padded)

    grid = (N, s_padded // tile_s)
    kernel = _make_kernel(C, tile_s, S, M, a, b, needs_mask)

    out = pl.pallas_call(
        kernel,
        out_shape=jax.ShapeDtypeStruct((1, 1), jnp.float32),
        grid_spec=pltpu.PrefetchScalarGridSpec(
            num_scalar_prefetch=0,
            grid=grid,
            in_specs=[
                pl.BlockSpec((1, C, tile_s), lambda n, s: (n, 0, s)),
                pl.BlockSpec((1, 1, tile_s), lambda n, s: (n, 0, s)),
            ],
            out_specs=pl.BlockSpec((1, 1), lambda n, s: (0, 0)),
            scratch_shapes=[
                pltpu.VMEM((C, 1), jnp.float32),   # per-class intersection
                pltpu.VMEM((C, 1), jnp.float32),   # per-class softmax sum
                pltpu.VMEM((C, 1), jnp.float32),   # per-class target count
                pltpu.VMEM((1, 1), jnp.float32),   # cross-entropy sum
            ],
        ),
        compiler_params=pltpu.CompilerParams(
            dimension_semantics=("arbitrary", "arbitrary")),
        # TODO(synk): on v7x the single resident accumulator keeps both grid
        # axes "arbitrary" (no 2-TC split); a per-core partial-sum variant
        # could add ~2x there.
    )(x3, t3)

    return out[0, 0]


def _reference(inputs, target, a=0.2, b=0.8):
    x = inputs.astype(jnp.float32)
    N, C = x.shape[0], x.shape[1]
    xf = x.reshape(N, C, -1)
    tf = target.reshape(N, -1)
    logp = jax.nn.log_softmax(xf, axis=1)
    ce = -jnp.mean(jnp.take_along_axis(logp, tf[:, None, :], axis=1))
    p = jax.nn.softmax(xf, axis=1)
    onehot = jnp.moveaxis(jax.nn.one_hot(tf, C, dtype=jnp.float32), -1, 1)
    total = 0.0
    for i in range(C):
        inter = jnp.sum(p[:, i] * onehot[:, i])
        num = 2.0 * inter + 1.0
        den = jnp.sum(p[:, i]) + jnp.sum(onehot[:, i]) + 1.0
        total = total + (1.0 - num / den)
    dice = total / C
    return a * ce + b * dice


if __name__ == "__main__":
    key = jax.random.PRNGKey(0)
    k1, k2 = jax.random.split(key)

    # small 3-D segmentation shapes: N=2 volumes, C=6 classes, 4x8x8 voxels
    inputs = jax.random.normal(k1, (2, 6, 4, 8, 8), jnp.float32)
    target = jax.random.randint(k2, (2, 4, 8, 8), 0, 6, jnp.int32)

    loss = multi_loss_ce_dice(inputs, target, a=0.2, b=0.8)
    loss = jax.block_until_ready(loss)

    ref = _reference(inputs, target, a=0.2, b=0.8)
    np.testing.assert_allclose(np.asarray(loss), np.asarray(ref),
                               rtol=1e-5, atol=1e-5)

    print("KERNEL_OK")
</pallas_src>

<mosaic_0001>
module attributes {stable_mosaic.version = 11 : i64} {
  func.func @kernel(%arg0: i32, %arg1: i32, %arg2: memref<1x6x256xf32, #tpu.memory_space<vmem>>, %arg3: memref<1x1x256xi32, #tpu.memory_space<vmem>>, %arg4: memref<1x1xf32, #tpu.memory_space<vmem>>, %arg5: memref<6x1xf32, #tpu.memory_space<vmem>>, %arg6: memref<6x1xf32, #tpu.memory_space<vmem>>, %arg7: memref<6x1xf32, #tpu.memory_space<vmem>>, %arg8: memref<1x1xf32, #tpu.memory_space<vmem>>) attributes {dimension_semantics = [#tpu.dimension_semantics<arbitrary>, #tpu.dimension_semantics<arbitrary>], iteration_bounds = array<i64: 2, 1>, scalar_prefetch = 0 : i64, scratch_operands = 4 : i64, tpu.core_type = #tpu.core_type<tc>, window_params = [{transform_indices = @transform_0, window_bounds = array<i64: 1, 6, 256>}, {transform_indices = @transform_1, window_bounds = array<i64: 1, 1, 256>}, {pipeline_mode = #tpu.pipeline_mode<synchronous>, transform_indices = @transform_2, window_bounds = array<i64: 1, 1>}]} {
    %c0_i32 = arith.constant 0 : i32
    %0 = arith.cmpi eq, %arg0, %c0_i32 : i32
    %c0_i32_0 = arith.constant 0 : i32
    %1 = arith.cmpi eq, %arg1, %c0_i32_0 : i32
    %2 = arith.andi %0, %1 : i1
    %3 = arith.extui %2 : i1 to i32
    %c0_i32_1 = arith.constant 0 : i32
    %4 = arith.cmpi ne, %3, %c0_i32_1 : i32
    scf.if %4 {
      %cst_32 = arith.constant 0.000000e+00 : f32
      %57 = vector.broadcast %cst_32 : f32 to vector<6x1xf32>
      %c0_33 = arith.constant 0 : index
      %c0_34 = arith.constant 0 : index
      %58 = vector.load %arg5[%c0_33, %c0_34] : memref<6x1xf32, #tpu.memory_space<vmem>>, vector<6x1xf32>
      tpu.vector_store %arg5[%c0_33, %c0_34], %57 {strides = array<i32>} : memref<6x1xf32, #tpu.memory_space<vmem>>, vector<6x1xf32>,
      %cst_35 = arith.constant 0.000000e+00 : f32
      %59 = vector.broadcast %cst_35 : f32 to vector<6x1xf32>
      %c0_36 = arith.constant 0 : index
      %c0_37 = arith.constant 0 : index
      %60 = vector.load %arg6[%c0_36, %c0_37] : memref<6x1xf32, #tpu.memory_space<vmem>>, vector<6x1xf32>
      tpu.vector_store %arg6[%c0_36, %c0_37], %59 {strides = array<i32>} : memref<6x1xf32, #tpu.memory_space<vmem>>, vector<6x1xf32>,
      %cst_38 = arith.constant 0.000000e+00 : f32
      %61 = vector.broadcast %cst_38 : f32 to vector<6x1xf32>
      %c0_39 = arith.constant 0 : index
      %c0_40 = arith.constant 0 : index
      %62 = vector.load %arg7[%c0_39, %c0_40] : memref<6x1xf32, #tpu.memory_space<vmem>>, vector<6x1xf32>
      tpu.vector_store %arg7[%c0_39, %c0_40], %61 {strides = array<i32>} : memref<6x1xf32, #tpu.memory_space<vmem>>, vector<6x1xf32>,
      %cst_41 = arith.constant 0.000000e+00 : f32
      %63 = vector.broadcast %cst_41 : f32 to vector<1x1xf32>
      %c0_42 = arith.constant 0 : index
      %c0_43 = arith.constant 0 : index
      %64 = vector.load %arg8[%c0_42, %c0_43] : memref<1x1xf32, #tpu.memory_space<vmem>>, vector<1x1xf32>
      tpu.vector_store %arg8[%c0_42, %c0_43], %63 {strides = array<i32>} : memref<1x1xf32, #tpu.memory_space<vmem>>, vector<1x1xf32>,
    } else {
    }
    %c0 = arith.constant 0 : index
    %c0_2 = arith.constant 0 : index
    %c0_3 = arith.constant 0 : index
    %5 = vector.load %arg2[%c0, %c0_2, %c0_3] : memref<1x6x256xf32, #tpu.memory_space<vmem>>, vector<1x6x256xf32>
    %6 = vector.shape_cast %5 : vector<1x6x256xf32> to vector<6x256xf32>
    %c0_4 = arith.constant 0 : index
    %c0_5 = arith.constant 0 : index
    %c0_6 = arith.constant 0 : index
    %7 = vector.load %arg3[%c0_4, %c0_5, %c0_6] : memref<1x1x256xi32, #tpu.memory_space<vmem>>, vector<1x1x256xi32>
    %8 = vector.shape_cast %7 : vector<1x1x256xi32> to vector<1x256xi32>
    %9 = tpu.iota {dimensions = array<i32: 0>} : vector<6x256xi32>
    %10 = vector.broadcast %8 : vector<1x256xi32> to vector<6x256xi32>
    %11 = arith.cmpi eq, %9, %10 : vector<6x256xi32>
    %12 = arith.extui %11 : vector<6x256xi1> to vector<6x256xi32>
    %13 = arith.sitofp %12 : vector<6x256xi32> to vector<6x256xf32>
    %cst = arith.constant dense<0xFF800000> : vector<256xf32>
    %14 = vector.multi_reduction <maximumf>, %6, %cst [0] : vector<6x256xf32> to vector<256xf32>
    %15 = vector.shape_cast %14 : vector<256xf32> to vector<1x256xf32>
    %16 = vector.broadcast %15 : vector<1x256xf32> to vector<6x256xf32>
    %17 = arith.subf %6, %16 : vector<6x256xf32>
    %18 = math.exp %17 : vector<6x256xf32>
    %cst_7 = arith.constant dense<0.000000e+00> : vector<256xf32>
    %19 = vector.multi_reduction <add>, %18, %cst_7 [0] : vector<6x256xf32> to vector<256xf32>
    %20 = vector.shape_cast %19 : vector<256xf32> to vector<1x256xf32>
    %cst_8 = arith.constant 1.000000e+00 : f32
    %21 = vector.broadcast %cst_8 : f32 to vector<1x256xf32>
    %22 = arith.divf %21, %20 : vector<1x256xf32>
    %23 = math.log %20 : vector<1x256xf32>
    %24 = vector.broadcast %22 : vector<1x256xf32> to vector<6x256xf32>
    %25 = arith.mulf %18, %24 : vector<6x256xf32>
    %26 = arith.mulf %6, %13 : vector<6x256xf32>
    %cst_9 = arith.constant dense<0.000000e+00> : vector<256xf32>
    %27 = vector.multi_reduction <add>, %26, %cst_9 [0] : vector<6x256xf32> to vector<256xf32>
    %28 = vector.shape_cast %27 : vector<256xf32> to vector<1x256xf32>
    %29 = arith.addf %15, %23 : vector<1x256xf32>
    %30 = arith.subf %29, %28 : vector<1x256xf32>
    %c0_10 = arith.constant 0 : index
    %c0_11 = arith.constant 0 : index
    %31 = vector.load %arg5[%c0_10, %c0_11] : memref<6x1xf32, #tpu.memory_space<vmem>>, vector<6x1xf32>
    %32 = arith.mulf %25, %13 : vector<6x256xf32>
    %cst_12 = arith.constant dense<0.000000e+00> : vector<6xf32>
    %33 = vector.multi_reduction <add>, %32, %cst_12 [1] : vector<6x256xf32> to vector<6xf32>
    %34 = vector.shape_cast %33 : vector<6xf32> to vector<6x1xf32>
    %35 = arith.addf %31, %34 : vector<6x1xf32>
    %c0_13 = arith.constant 0 : index
    %c0_14 = arith.constant 0 : index
    %36 = vector.load %arg5[%c0_13, %c0_14] : memref<6x1xf32, #tpu.memory_space<vmem>>, vector<6x1xf32>
    tpu.vector_store %arg5[%c0_13, %c0_14], %35 {strides = array<i32>} : memref<6x1xf32, #tpu.memory_space<vmem>>, vector<6x1xf32>,
    %c0_15 = arith.constant 0 : index
    %c0_16 = arith.constant 0 : index
    %37 = vector.load %arg6[%c0_15, %c0_16] : memref<6x1xf32, #tpu.memory_space<vmem>>, vector<6x1xf32>
    %cst_17 = arith.constant dense<0.000000e+00> : vector<6xf32>
    %38 = vector.multi_reduction <add>, %25, %cst_17 [1] : vector<6x256xf32> to vector<6xf32>
    %39 = vector.shape_cast %38 : vector<6xf32> to vector<6x1xf32>
    %40 = arith.addf %37, %39 : vector<6x1xf32>
    %c0_18 = arith.constant 0 : index
    %c0_19 = arith.constant 0 : index
    %41 = vector.load %arg6[%c0_18, %c0_19] : memref<6x1xf32, #tpu.memory_space<vmem>>, vector<6x1xf32>
    tpu.vector_store %arg6[%c0_18, %c0_19], %40 {strides = array<i32>} : memref<6x1xf32, #tpu.memory_space<vmem>>, vector<6x1xf32>,
    %c0_20 = arith.constant 0 : index
    %c0_21 = arith.constant 0 : index
    %42 = vector.load %arg7[%c0_20, %c0_21] : memref<6x1xf32, #tpu.memory_space<vmem>>, vector<6x1xf32>
    %cst_22 = arith.constant dense<0.000000e+00> : vector<6xf32>
    %43 = vector.multi_reduction <add>, %13, %cst_22 [1] : vector<6x256xf32> to vector<6xf32>
    %44 = vector.shape_cast %43 : vector<6xf32> to vector<6x1xf32>
    %45 = arith.addf %42, %44 : vector<6x1xf32>
    %c0_23 = arith.constant 0 : index
    %c0_24 = arith.constant 0 : index
    %46 = vector.load %arg7[%c0_23, %c0_24] : memref<6x1xf32, #tpu.memory_space<vmem>>, vector<6x1xf32>
    tpu.vector_store %arg7[%c0_23, %c0_24], %45 {strides = array<i32>} : memref<6x1xf32, #tpu.memory_space<vmem>>, vector<6x1xf32>,
    %c0_25 = arith.constant 0 : index
    %c0_26 = arith.constant 0 : index
    %47 = vector.load %arg8[%c0_25, %c0_26] : memref<1x1xf32, #tpu.memory_space<vmem>>, vector<1x1xf32>
    %cst_27 = arith.constant dense<0.000000e+00> : vector<1xf32>
    %48 = vector.multi_reduction <add>, %30, %cst_27 [1] : vector<1x256xf32> to vector<1xf32>
    %49 = vector.shape_cast %48 : vector<1xf32> to vector<1x1xf32>
    %50 = arith.addf %47, %49 : vector<1x1xf32>
    %c0_28 = arith.constant 0 : index
    %c0_29 = arith.constant 0 : index
    %51 = vector.load %arg8[%c0_28, %c0_29] : memref<1x1xf32, #tpu.memory_space<vmem>>, vector<1x1xf32>
    tpu.vector_store %arg8[%c0_28, %c0_29], %50 {strides = array<i32>} : memref<1x1xf32, #tpu.memory_space<vmem>>, vector<1x1xf32>,
    %c1_i32 = arith.constant 1 : i32
    %52 = arith.cmpi eq, %arg0, %c1_i32 : i32
    %c0_i32_30 = arith.constant 0 : i32
    %53 = arith.cmpi eq, %arg1, %c0_i32_30 : i32
    %54 = arith.andi %52, %53 : i1
    %55 = arith.extui %54 : i1 to i32
    %c0_i32_31 = arith.constant 0 : i32
    %56 = arith.cmpi ne, %55, %c0_i32_31 : i32
    scf.if %56 {
      %c0_32 = arith.constant 0 : index
      %c0_33 = arith.constant 0 : index
      %57 = vector.load %arg5[%c0_32, %c0_33] : memref<6x1xf32, #tpu.memory_space<vmem>>, vector<6x1xf32>
      %cst_34 = arith.constant 2.000000e+00 : f32
      %58 = vector.broadcast %cst_34 : f32 to vector<6x1xf32>
      %59 = arith.mulf %58, %57 : vector<6x1xf32>
      %cst_35 = arith.constant 1.000000e+00 : f32
      %60 = vector.broadcast %cst_35 : f32 to vector<6x1xf32>
      %61 = arith.addf %59, %60 : vector<6x1xf32>
      %c0_36 = arith.constant 0 : index
      %c0_37 = arith.constant 0 : index
      %62 = vector.load %arg6[%c0_36, %c0_37] : memref<6x1xf32, #tpu.memory_space<vmem>>, vector<6x1xf32>
      %c0_38 = arith.constant 0 : index
      %c0_39 = arith.constant 0 : index
      %63 = vector.load %arg7[%c0_38, %c0_39] : memref<6x1xf32, #tpu.memory_space<vmem>>, vector<6x1xf32>
      %64 = arith.addf %62, %63 : vector<6x1xf32>
      %cst_40 = arith.constant 1.000000e+00 : f32
      %65 = vector.broadcast %cst_40 : f32 to vector<6x1xf32>
      %66 = arith.addf %64, %65 : vector<6x1xf32>
      %67 = arith.divf %61, %66 : vector<6x1xf32>
      %cst_41 = arith.constant 1.000000e+00 : f32
      %68 = vector.broadcast %cst_41 : f32 to vector<6x1xf32>
      %69 = arith.subf %68, %67 : vector<6x1xf32>
      %cst_42 = arith.constant dense<0.000000e+00> : vector<1xf32>
      %70 = vector.multi_reduction <add>, %69, %cst_42 [0] : vector<6x1xf32> to vector<1xf32>
      %71 = vector.shape_cast %70 : vector<1xf32> to vector<1x1xf32>
      %cst_43 = arith.constant 0.166666672 : f32
      %72 = vector.broadcast %cst_43 : f32 to vector<1x1xf32>
      %73 = arith.mulf %71, %72 : vector<1x1xf32>
      %c0_44 = arith.constant 0 : index
      %c0_45 = arith.constant 0 : index
      %74 = vector.load %arg8[%c0_44, %c0_45] : memref<1x1xf32, #tpu.memory_space<vmem>>, vector<1x1xf32>
      %cst_46 = arith.constant 0.001953125 : f32
      %75 = vector.broadcast %cst_46 : f32 to vector<1x1xf32>
      %76 = arith.mulf %74, %75 : vector<1x1xf32>
      %cst_47 = arith.constant 2.000000e-01 : f32
      %77 = vector.broadcast %cst_47 : f32 to vector<1x1xf32>
      %78 = arith.mulf %77, %76 : vector<1x1xf32>
      %cst_48 = arith.constant 8.000000e-01 : f32
      %79 = vector.broadcast %cst_48 : f32 to vector<1x1xf32>
      %80 = arith.mulf %79, %73 : vector<1x1xf32>
      %81 = arith.addf %78, %80 : vector<1x1xf32>
      %c0_49 = arith.constant 0 : index
      %c0_50 = arith.constant 0 : index
      %82 = vector.load %arg4[%c0_49, %c0_50] : memref<1x1xf32, #tpu.memory_space<vmem>>, vector<1x1xf32>
      tpu.vector_store %arg4[%c0_49, %c0_50], %81 {strides = array<i32>} : memref<1x1xf32, #tpu.memory_space<vmem>>, vector<1x1xf32>,
    } else {
    }
    return
  }
  func.func @transform_0(%arg0: i32, %arg1: i32) -> (i32, i32, i32) {
    %c0_i32 = arith.constant 0 : i32
    %c0_i32_0 = arith.constant 0 : i32
    return %arg0, %c0_i32, %arg1 : i32, i32, i32
  }
  func.func @transform_1(%arg0: i32, %arg1: i32) -> (i32, i32, i32) {
    %c0_i32 = arith.constant 0 : i32
    %c0_i32_0 = arith.constant 0 : i32
    return %arg0, %c0_i32, %arg1 : i32, i32, i32
  }
  func.func @transform_2(%arg0: i32, %arg1: i32) -> (i32, i32) {
    %c0_i32 = arith.constant 0 : i32
    %c0_i32_0 = arith.constant 0 : i32
    %c0_i32_1 = arith.constant 0 : i32
    return %c0_i32, %c0_i32_0 : i32, i32
  }
}

</mosaic_0001>

<llo_original>
// kernel: tpu_custom_call.1
$region0: #{tpu_custom_call.1}
  #allocation0 [shape = 'u32[]', space=smem, size = 0x4, offset = 0x4, fixed_abs, tag = 'smem constant byte address 0x4 - core index']
  #allocation1 [shape = 'u32[144,128]{1,0:T(1,128)}', space=vmem, size = 0x12000, scoped, tag = 'internal scratch']
  #allocation2 [shape = 'f32[6,1]{1,0:T(8,128)}', space=vmem, size = 0x1000, scoped, tag = 'scratch operand']
  #allocation3 [shape = 'f32[6,1]{1,0:T(8,128)}', space=vmem, size = 0x1000, scoped, tag = 'scratch operand']
  #allocation4 [shape = 'f32[6,1]{1,0:T(8,128)}', space=vmem, size = 0x1000, scoped, tag = 'scratch operand']
  #allocation5 [shape = 'f32[1,1]{1,0:T(1,128)}', space=vmem, size = 0x200, scoped, tag = 'scratch operand']
  %s0 = inlined_call_operand.vmem [shape: f32[2,6,256], index: 0, kind: input, shape index: {}]
  %s1 = inlined_call_operand.vmem [shape: s32[2,1,256], index: 1, kind: input, shape index: {}]
  %s2 = inlined_call_operand.hbm [shape: f32[1,1], index: 2, kind: output, shape index: {}]
  %s3 = sld [smem:[#allocation0]]
  $region49: #{tpu_custom_call.1} parent=0
    _
  %s5 = ssub.s32 1, %s3
  %s6 = scalar_select 0, %s5, %s3
  $region1: #{tpu_custom_call.1} parent=0
    #allocation6 [shape = 'u8[512]{0}', space=vmem, size = 0x400, scoped, tag = 'output window, operand 0, single buffered']
    #allocation7 [shape = 's32[2]{0}', space=sflag, size = 0x8, scoped, tag = 'scoped memory for tpu_custom_call.1']
    %7 = vsyncpa [#allocation7], 0
    loop: start=0, step=1, limit=4
    $region2: #{tpu_custom_call.1} parent=1 // loop_pre_header
      _
    $region3: #{tpu_custom_call.1} parent=1 // loop_header
      %s9 = sphi 0, %s13
      %p10 = scmp.ge.s32.totalorder %s9, 4
      %s16 = sphi 0, %s28
      %s17 = sphi 0, %s24
      %s18 = sphi 0, %s16
      %s19 = sphi 0, %s17
      %s20 = sphi 0, %s18
      %s21 = sphi 0, %s19
      %s33 = sphi 0, %s35
      %s36 = sphi 0, %s33
      %s37 = sphi 0, %s36
      %s53 = sphi 0, %s37
      %s61 = sphi 0, %s63
      %s64 = sphi 0, %s61
      %s65 = sphi 0, %s64
      %s81 = sphi 0, %s65
      %s85 = sphi 0, %s85
      %s87 = sphi 0, %s85
      %s88 = sphi 0, %s87
      %s102 = sphi 0, %s88
    $region4: #{tpu_custom_call.1} parent=1 // loop_header_branch
      %12 = sbr.rel (%p10) target = $region8
    $region5: #{tpu_custom_call.1} parent=1 // loop_body
      %s14 = ssub.s32 %s9, 1
      %s15 = ssub.s32 %s9, 2
      %s22 = sadd.s32 1, %s17
      %p23 = scmp.ge.s32.totalorder %s22, 1
      %s24 = scalar_select %p23, 0, %s22
      %s25 = sadd.s32 1, %s16
      %s26 = scalar_select %p23, %s25, %s16
      %p27 = scmp.ge.s32.totalorder %s26, 2
      %s28 = scalar_select %p27, 0, %s26
      %s29 = ssub.s32 %s16, %s28
      %s30 = ssub.s32 %s17, %s24
      %s31 = sor.u32 %s29, %s30
      %p32 = scmp.eq.s32.totalorder %s31, 0
      %s34 = sadd.s32 %s33, 1
      %s35 = scalar_select %p32, %s33, %s34
      %p38 = pneg %p32
      %p39 = scmp.eq.s32.totalorder %s9, 1
      %p40 = por %p38, %p39
      %p41 = scmp.ne.s32.totalorder %s33, %s36
      %p42 = scmp.eq.s32.totalorder %s9, 0
      %p43 = por %p41, %p42
      %p44 = scmp.ne.s32.totalorder %s33, %s36
      %p45 = scmp.eq.s32.totalorder %s14, 1
      %p46 = por %p44, %p45
      %p47 = scmp.ne.s32.totalorder %s36, %s37
      %p48 = scmp.eq.s32.totalorder %s14, 0
      %p49 = por %p47, %p48
      %p50 = scmp.ne.s32.totalorder %s36, %s37
      %p51 = scmp.eq.s32.totalorder %s15, 1
      %p52 = por %p50, %p51
      %p54 = scmp.ne.s32.totalorder %s37, %s53
      %p55 = scmp.eq.s32.totalorder %s15, 0
      %p56 = por %p54, %p55
      %s57 = ssub.s32 %s16, %s28
      %s58 = ssub.s32 %s17, %s24
      %s59 = sor.u32 %s57, %s58
      %p60 = scmp.eq.s32.totalorder %s59, 0
      %s62 = sadd.s32 %s61, 1
      %s63 = scalar_select %p60, %s61, %s62
      %p66 = pneg %p60
      %p67 = scmp.eq.s32.totalorder %s9, 1
      %p68 = por %p66, %p67
      %p69 = scmp.ne.s32.totalorder %s61, %s64
      %p70 = scmp.eq.s32.totalorder %s9, 0
      %p71 = por %p69, %p70
      %p72 = scmp.ne.s32.totalorder %s61, %s64
      %p73 = scmp.eq.s32.totalorder %s14, 1
      %p74 = por %p72, %p73
      %p75 = scmp.ne.s32.totalorder %s64, %s65
      %p76 = scmp.eq.s32.totalorder %s14, 0
      %p77 = por %p75, %p76
      %p78 = scmp.ne.s32.totalorder %s64, %s65
      %p79 = scmp.eq.s32.totalorder %s15, 1
      %p80 = por %p78, %p79
      %p82 = scmp.ne.s32.totalorder %s65, %s81
      %p83 = scmp.eq.s32.totalorder %s15, 0
      %p84 = por %p82, %p83
      %s86 = sadd.s32 %s85, 1
      %p89 = scmp.eq.s32.totalorder %s9, 1
      %p90 = scmp.ne.s32.totalorder %s85, %s87
      %p91 = scmp.eq.s32.totalorder %s9, 0
      %p92 = por %p90, %p91
      %p93 = scmp.ne.s32.totalorder %s85, %s87
      %p94 = scmp.eq.s32.totalorder %s14, 1
      %p95 = por %p93, %p94
      %p96 = scmp.ne.s32.totalorder %s87, %s88
      %p97 = scmp.eq.s32.totalorder %s14, 0
      %p98 = por %p96, %p97
      %p99 = scmp.ne.s32.totalorder %s87, %s88
      %p100 = scmp.eq.s32.totalorder %s15, 1
      %p101 = por %p99, %p100
      %p103 = scmp.ne.s32.totalorder %s88, %s102
      %p104 = scmp.eq.s32.totalorder %s15, 0
      %p105 = por %p103, %p104
      %p106 = scmp.le.s32.totalorder 1, %s9
      %p107 = scmp.lt.s32.totalorder %s9, 3
      %p108 = pnand %p106, %p107
      %p109 = pneg %p108
      // Predicated region
      $region9: #{tpu_custom_call.1} parent=5 // pred_check
        _
      $region10: #{tpu_custom_call.1} parent=5 // pred_check_branch
        %111 = sbr.rel (%p108) target = $region12
      $region11: #{tpu_custom_call.1} parent=5 // pred_region
        %s112 = ssub.s32 %s9, 1
      $region12: #{tpu_custom_call.1} parent=5 // pred_fallthru
        _
      %p113 = scmp.lt.s32.totalorder %s9, 2
      // Predicated region
      $region13: #{tpu_custom_call.1} parent=5 // pred_check
        %p114 = pneg %p113
      $region14: #{tpu_custom_call.1} parent=5 // pred_check_branch
        %116 = sbr.rel (%p114) target = $region16
      $region15: #{tpu_custom_call.1} parent=5 // pred_region
        // Predicated region
        $region17: #{tpu_custom_call.1} parent=15 // pred_check
          %p117 = pneg %p43
        $region18: #{tpu_custom_call.1} parent=15 // pred_check_branch
          %119 = sbr.rel (%p117) target = $region20
        $region19: #{tpu_custom_call.1} parent=15 // pred_region
          %s120 = smul.u32 2, %s17
          %p121 = scmp.lt.s32.totalorder %s16, 1
          %s122 = scalar_select %p121, %s16, 1
          %p123 = scmp.lt.s32.totalorder %s120, 1
          %s124 = scalar_select %p123, %s120, 1
          %s125 = smul.addr %s122, 2
          %s126 = sadd.s32 %s124, %s125
          %s127 = smul.addr %s126, 8
          %s128 = scalar_lea.vmem %s0, %s127
          %s129 = smul.u32 2, %s17
        $region20: #{tpu_custom_call.1} parent=15 // pred_fallthru
          _
        // Predicated region
        $region21: #{tpu_custom_call.1} parent=15 // pred_check
          %p130 = pneg %p71
        $region22: #{tpu_custom_call.1} parent=15 // pred_check_branch
          %132 = sbr.rel (%p130) target = $region24
        $region23: #{tpu_custom_call.1} parent=15 // pred_region
          %s133 = smul.u32 2, %s17
          %p134 = scmp.lt.s32.totalorder %s16, 1
          %s135 = scalar_select %p134, %s16, 1
          %p136 = scmp.lt.s32.totalorder %s133, 1
          %s137 = scalar_select %p136, %s133, 1
          %s138 = smul.addr %s135, 2
          %s139 = sadd.s32 %s137, %s138
          %s140 = scalar_lea.vmem %s1, %s139
          %s141 = smul.u32 2, %s17
        $region24: #{tpu_custom_call.1} parent=15 // pred_fallthru
          _
      $region16: #{tpu_custom_call.1} parent=5 // pred_fallthru
        _
      %p142 = scmp.le.s32.totalorder 1, %s9
      %p143 = scmp.lt.s32.totalorder %s9, 3
      %p144 = pnand %p142, %p143
      %p145 = pneg %p144
      // Predicated region
      $region25: #{tpu_custom_call.1} parent=5 // pred_check
        _
      $region26: #{tpu_custom_call.1} parent=5 // pred_check_branch
        %147 = sbr.rel (%p144) target = $region28
      $region27: #{tpu_custom_call.1} parent=5 // pred_region
        %s148 = ssub.s32 %s9, 1
        %s149 = smul.u32 2, %s19
        %p150 = scmp.lt.s32.totalorder %s18, 1
        %s151 = scalar_select %p150, %s18, 1
        %p152 = scmp.lt.s32.totalorder %s149, 1
        %s153 = scalar_select %p152, %s149, 1
        %s154 = smul.addr %s151, 2
        %s155 = sadd.s32 %s153, %s154
        %s156 = smul.addr %s155, 8
        %s157 = scalar_lea.vmem %s0, %s156
        %p158 = pneg %p49
        %p159 = pneg %p46
        %s160 = smul.u32 2, %s19
        %p161 = scmp.lt.s32.totalorder %s18, 1
        %s162 = scalar_select %p161, %s18, 1
        %p163 = scmp.lt.s32.totalorder %s160, 1
        %s164 = scalar_select %p163, %s160, 1
        %s165 = smul.addr %s162, 2
        %s166 = sadd.s32 %s164, %s165
        %s167 = scalar_lea.vmem %s1, %s166
        %p168 = pneg %p77
        %p169 = pneg %p74
        %p170 = pneg %p98
        %p171 = pneg %p95
        %s172 = smul.u32 2, %s19
        %p173 = scmp.lt.s32.totalorder %s18, 1
        %s174 = scalar_select %p173, %s18, 1
        %p175 = scmp.lt.s32.totalorder %s172, 1
        %s176 = scalar_select %p175, %s172, 1
        %s177 = smul.addr %s174, 2
        %s178 = sadd.s32 %s176, %s177
        %s179 = smul.addr %s178, 8
        %s180 = scalar_lea.vmem %s0, %s179
        %s181 = smul.u32 2, %s19
        %s182 = smul.u32 2, %s19
        %p183 = scmp.lt.s32.totalorder %s18, 1
        %s184 = scalar_select %p183, %s18, 1
        %p185 = scmp.lt.s32.totalorder %s182, 1
        %s186 = scalar_select %p185, %s182, 1
        %s187 = smul.addr %s184, 2
        %s188 = sadd.s32 %s186, %s187
        %s189 = scalar_lea.vmem %s1, %s188
        %s190 = smul.u32 2, %s19
        %p191 = scmp.eq.s32.totalorder %s18, 0
        %p192 = scmp.eq.s32.totalorder %s19, 0
        %p193 = pnand %p191, %p192
        %p194 = pneg %p193
        // Predicated region
        $region29: #{tpu_custom_call.1} parent=27 // pred_check
          _
        $region30: #{tpu_custom_call.1} parent=27 // pred_check_branch
          %196 = sbr.rel (%p193) target = $region32
        $region31: #{tpu_custom_call.1} parent=27 // pred_region
          %vm197 = vcmask 5120
          %198 = vst.msk [vmem:[#allocation2] sm:$0x3f] %vm197, 0.0
          %199 = vst.msk [vmem:[#allocation3] sm:$0x3f] %vm197, 0.0
          %200 = vst.msk [vmem:[#allocation4] sm:$0x3f] %vm197, 0.0
          %vm201 = vcmask 0
          %202 = vst.msk [vmem:[#allocation5] sm:$0x1] %vm201, 0.0
        $region32: #{tpu_custom_call.1} parent=27 // pred_fallthru
          _
        %v203 = vld [vmem:[%s180] sm:$0x3f]
        %v204 = vld [vmem:[%s180 + $0x8] sm:$0x3f]
        %v205 = vld [vmem:[%s189] sm:$0x3]
        %v206 = vlaneseq
        %v207 = vshrl.u32 %v206, 7
        %v208 = vlaneseq
        %v209 = vshrl.u32 %v208, 7
        %v210 = vsub.s32 0, %v209
        %v211 = vrot.slane %v205, %v210
        %v212 = vlaneseq
        %v213 = vshrl.u32 %v212, 7
        %v214 = vsub.s32 1, %v213
        %v215 = vrot.slane %v205, %v214
        %vm216 = vcmp.eq.s32.totalorder %v207, %v211
        %vm217 = vcmp.eq.s32.totalorder %v207, %v215
        %v218 = vsel %vm216, 1, 0
        %v219 = vsel %vm217, 1, 0
        %v220 = vcvt.s32.f32 %v218
        %v221 = vcvt.s32.f32 %v219
        %vm222 = vcmask 1045504
        %v223 = vsel %vm222, %v203, -inf
        %v224 = vrot.slane %v223, 4
        %v225 = vmax.f32 %v223, %v224
        %v226 = vrot.slane %v225, 2
        %v227 = vmax.f32 %v225, %v226
        %v228 = vrot.slane %v227, 1
        %v229 = vmax.f32 %v227, %v228
        %v230 = vsel %vm222, %v204, -inf
        %v231 = vrot.slane %v230, 4
        %v232 = vmax.f32 %v230, %v231
        %v233 = vrot.slane %v232, 2
        %v234 = vmax.f32 %v232, %v233
        %v235 = vrot.slane %v234, 1
        %v236 = vmax.f32 %v234, %v235
        %v237 = vsub.f32 %v203, %v229
        %v238 = vsub.f32 %v204, %v236
        %v239 = vmul.f32 %v237, 1.442695
        %v240 = vpow.pop %v239
        %v241 = vmul.f32 %v238, 1.442695
        %v242 = vpow.pop %v241
        %v243 = vsel %vm222, %v240, 0.0
        %v244 = vrot.slane %v243, 4
        %v245 = vadd.f32 %v243, %v244
        %v246 = vrot.slane %v245, 2
        %v247 = vadd.f32 %v245, %v246
        %v248 = vrot.slane %v247, 1
        %v249 = vadd.f32 %v247, %v248
        %v250 = vsel %vm222, %v242, 0.0
        %v251 = vrot.slane %v250, 4
        %v252 = vadd.f32 %v250, %v251
        %v253 = vrot.slane %v252, 2
        %v254 = vadd.f32 %v252, %v253
        %v255 = vrot.slane %v254, 1
        %v256 = vadd.f32 %v254, %v255
        %v257 = vrcp.pop %v249
        %v258 = vmul.f32 1.0, %v257
        %v259 = vrcp.pop %v256
        %v260 = vmul.f32 1.0, %v259
        %v261 = vlog2.pop %v249
        %v262 = vmul.f32 %v261, 0.6931472
        %v263 = vlog2.pop %v256
        %v264 = vmul.f32 %v263, 0.6931472
        %v265 = vmul.f32 %v240, %v258
        %v266 = vmul.f32 %v242, %v260
        %v267 = vmul.f32 %v203, %v220
        %v268 = vmul.f32 %v204, %v221
        %v269 = vsel %vm222, %v267, 0.0
        %v270 = vrot.slane %v269, 4
        %v271 = vadd.f32 %v269, %v270
        %v272 = vrot.slane %v271, 2
        %v273 = vadd.f32 %v271, %v272
        %v274 = vrot.slane %v273, 1
        %v275 = vadd.f32 %v273, %v274
        %v276 = vsel %vm222, %v268, 0.0
        %v277 = vrot.slane %v276, 4
        %v278 = vadd.f32 %v276, %v277
        %v279 = vrot.slane %v278, 2
        %v280 = vadd.f32 %v278, %v279
        %v281 = vrot.slane %v280, 1
        %v282 = vadd.f32 %v280, %v281
        %v283 = vadd.f32 %v229, %v262
        %v284 = vadd.f32 %v236, %v264
        %v285 = vsub.f32 %v283, %v275
        %v286 = vsub.f32 %v284, %v282
        %v287 = vld [vmem:[#allocation2] sm:$0x3f]
        %v288 = vmul.f32 %v265, %v220
        %v289 = vmul.f32 %v266, %v221
        %v290 = vsel %vm222, %v288, 0.0
        %v291 = vsel %vm222, %v289, 0.0
        %v292 = vadd.f32 %v290, %v291
        %293 = vadd.xlane.f32.xlu0 %v292
        %v294 = vpop.xlane.xlu0 %293
        %v295 = vadd.f32 %v287, %v294
        %vm296 = vcmask 5120
        %297 = vst.msk [vmem:[#allocation2] sm:$0x3f] %vm296, %v295
        %v298 = vld [vmem:[#allocation3] sm:$0x3f]
        %v299 = vsel %vm222, %v265, 0.0
        %v300 = vsel %vm222, %v266, 0.0
        %v301 = vadd.f32 %v299, %v300
        %302 = vadd.xlane.f32.xlu0 %v301
        %v303 = vpop.xlane.xlu0 %302
        %v304 = vadd.f32 %v298, %v303
        %305 = vst.msk [vmem:[#allocation3] sm:$0x3f] %vm296, %v304
        %v306 = vld [vmem:[#allocation4] sm:$0x3f]
        %v307 = vsel %vm222, %v220, 0.0
        %v308 = vsel %vm222, %v221, 0.0
        %v309 = vadd.f32 %v307, %v308
        %310 = vadd.xlane.f32.xlu0 %v309
        %v311 = vpop.xlane.xlu0 %310
        %v312 = vadd.f32 %v306, %v311
        %313 = vst.msk [vmem:[#allocation4] sm:$0x3f] %vm296, %v312
        %v314 = vld [vmem:[#allocation5] sm:$0x1]
        %v315 = vadd.f32 %v285, %v286
        %316 = vadd.xlane.f32.xlu0 %v315
        %v317 = vpop.xlane.xlu0 %316
        %v318 = vadd.f32 %v314, %v317
        %vm319 = vcmask 0
        %320 = vst.msk [vmem:[#allocation5] sm:$0x1] %vm319, %v318
        %p321 = scmp.eq.s32.totalorder %s18, 1
        %p322 = pnand %p321, %p192
        %p323 = pneg %p322
        // Predicated region
        $region33: #{tpu_custom_call.1} parent=27 // pred_check
          _
        $region34: #{tpu_custom_call.1} parent=27 // pred_check_branch
          %325 = sbr.rel (%p322) target = $region36
        $region35: #{tpu_custom_call.1} parent=27 // pred_region
          %v326 = vld [vmem:[#allocation2] sm:$0x3f]
          %v327 = vmul.f32 %v326, 2.0
          %v328 = vadd.f32 %v327, 1.0
          %v329 = vld [vmem:[#allocation3] sm:$0x3f]
          %v330 = vld [vmem:[#allocation4] sm:$0x3f]
          %v331 = vadd.f32 %v329, %v330
          %v332 = vadd.f32 %v331, 1.0
          %v333 = vrcp.pop %v332
          %v334 = vmul.f32 %v328, %v333
          %v335 = vsub.f32 1.0, %v334
          %v336 = vsel %vm296, %v335, 0.0
          %v337 = vrot.slane %v336, 4
          %v338 = vadd.f32 %v336, %v337
          %v339 = vrot.slane %v338, 2
          %v340 = vadd.f32 %v338, %v339
          %v341 = vrot.slane %v340, 1
          %v342 = vadd.f32 %v340, %v341
          %v343 = vmul.f32 %v342, 0.16666667
          %v344 = vld [vmem:[#allocation5] sm:$0x1]
          %v345 = vmul.f32 %v344, 0.001953125
          %v346 = vmul.f32 %v345, 0.2
          %v347 = vmul.f32 %v343, 0.8
          %v348 = vadd.f32 %v346, %v347
          %349 = vst.msk [vmem:[#allocation6] sm:$0x1] %vm319, %v348
        $region36: #{tpu_custom_call.1} parent=27 // pred_fallthru
          _
        // Predicated region
        $region37: #{tpu_custom_call.1} parent=27 // pred_check
          %p350 = pneg %p95
        $region38: #{tpu_custom_call.1} parent=27 // pred_check_branch
          %352 = sbr.rel (%p350) target = $region40
        $region39: #{tpu_custom_call.1} parent=27 // pred_region
          %s354 = ssub.s32 16, 16
          %355 = vsyncadd [#allocation7], %s354
          %s357 = sshll.u32 [#allocation6], 4
          %s358 = int_to_ptr.vmem [resolvable:$true] %s357
          %360 = dma.vmem_to_hbm [thread:$0]  %s358, 16, %s2, [#allocation7]
        $region40: #{tpu_custom_call.1} parent=27 // pred_fallthru
          _
        // Predicated region
        $region41: #{tpu_custom_call.1} parent=27 // pred_check
          %p361 = pneg %p95
        $region42: #{tpu_custom_call.1} parent=27 // pred_check_branch
          %363 = sbr.rel (%p361) target = $region44
        $region43: #{tpu_custom_call.1} parent=27 // pred_region
          %364 = dma.done [#allocation7], 16
        $region44: #{tpu_custom_call.1} parent=27 // pred_fallthru
          _
      $region28: #{tpu_custom_call.1} parent=5 // pred_fallthru
        _
      %p365 = scmp.le.s32.totalorder 2, %s9
      // Predicated region
      $region45: #{tpu_custom_call.1} parent=5 // pred_check
        %p366 = pneg %p365
      $region46: #{tpu_custom_call.1} parent=5 // pred_check_branch
        %368 = sbr.rel (%p366) target = $region48
      $region47: #{tpu_custom_call.1} parent=5 // pred_region
        %s369 = ssub.s32 %s9, 2
      $region48: #{tpu_custom_call.1} parent=5 // pred_fallthru
        _
    $region6: #{tpu_custom_call.1} parent=1 // loop_footer
      %s13 = sadd.s32 1, %s9
    $region7: #{tpu_custom_call.1} parent=1 // loop_footer_branch
      %8 = sbr.rel target = $region3
    $region8: #{tpu_custom_call.1} parent=1 // loop_exit
      _
    %370 = vsyncpa [#allocation7], 1
    %s371 = scalar_lea.sflag [#allocation7], 1
    %372 = vsyncpa %s371, 1

</llo_original>
